<compile_context>
chip_gen: v6e
topology: v6e:2x2x1
jax: 0.10.0
libtpu: 0.0.40
codegen_flags: <defaults>
</compile_context>

<pallas_src>
import functools

import jax
import jax.numpy as jnp
from jax.experimental import pallas as pl
from jax.experimental.pallas import tpu as pltpu


# ----------------------------------------------------------------------------
# Kernel 1: streamed shared encoder over Din chunks (all 4 views per step).
#   grid = (P, KC)   P  = Din halves  ("parallel": v7x uses both TensorCores)
#                    KC = chunks/half ("arbitrary": accumulation axis)
#   out  = r_partial [P, 4B, R] f32 — per-half partial sums, combined later.
# ----------------------------------------------------------------------------
def encoder_kernel(x_ref, y_ref, z_ref, w_ref, wb_ref, r_ref):
    k = pl.program_id(1)

    @pl.when(k == 0)
    def _init():
        r_ref[...] = jnp.zeros_like(r_ref)

    # One MXU weight-push per step: stack the four views' chunks -> [4B, TK].
    lhs = jnp.concatenate(
        [x_ref[...], y_ref[...], z_ref[...], w_ref[...]], axis=0
    ).astype(jnp.bfloat16)
    r_ref[...] += jnp.dot(lhs, wb_ref[...], preferred_element_type=jnp.float32)


# ----------------------------------------------------------------------------
# Kernel 2 (epilogue): combine Din-half partials + encoder bias, projector on
# the x/y views, VICReg losses, temporal-order BCE loss.  Outputs 5 scalars in
# SMEM: [total_loss, repr_loss, std_loss, cov_loss, temporal_loss].
# ----------------------------------------------------------------------------
def epilogue_kernel(r_ref, bb_ref, w1_ref, b1_ref, g1_ref, be1_ref, w2_ref,
                    wt_ref, bt_ref, idx_ref, lbl_ref, out_ref, *,
                    batch_size, sim_coeff, std_coeff, cov_coeff,
                    temporal_coeff):
    f32 = jnp.float32
    bf16 = jnp.bfloat16
    B = batch_size

    # combine the Din-half partial sums + encoder bias -> representations
    r_all = r_ref[0] + r_ref[1] + bb_ref[...]                       # [4B, R] f32

    # ---- projector: Linear -> BatchNorm1d(train) -> ReLU -> Linear(no bias) -
    # Only the x / y projections feed the loss (z / w projections are unused by
    # the reference forward); BatchNorm stats are computed per view.
    r_xy = r_all[0:2 * B]                                           # [2B, R]
    h = jnp.dot(r_xy.astype(bf16), w1_ref[...],
                preferred_element_type=f32) + b1_ref[...]           # [2B, H1]

    g1 = g1_ref[...]
    be1 = be1_ref[...]

    def bn_relu(hv):
        # training-mode (biased) batch stats, eps = 1e-5
        mu = jnp.mean(hv, axis=0, keepdims=True)
        m2 = jnp.mean(hv * hv, axis=0, keepdims=True)
        var = jnp.maximum(m2 - mu * mu, 0.0)
        hn = (hv - mu) * jax.lax.rsqrt(var + 1e-5)
        return jnp.maximum(hn * g1 + be1, 0.0)                      # ReLU

    # single fused final matmul: stacked [2B, H1] @ [H1, E]
    h_act = jnp.concatenate([bn_relu(h[0:B]), bn_relu(h[B:2 * B])], axis=0)
    e_xy = jnp.dot(h_act.astype(bf16), w2_ref[...],
                   preferred_element_type=f32)                      # [2B, E]
    ex = e_xy[0:B]
    ey = e_xy[B:2 * B]
    E = ex.shape[1]

    # ---- VICReg losses ------------------------------------------------------
    d = ex - ey
    repr_loss = jnp.mean(d * d)                                     # F.mse_loss

    xc = ex - jnp.mean(ex, axis=0, keepdims=True)
    yc = ey - jnp.mean(ey, axis=0, keepdims=True)

    sumsq_x = jnp.sum(xc * xc, axis=0, keepdims=True)               # [1, E]
    sumsq_y = jnp.sum(yc * yc, axis=0, keepdims=True)
    # torch.var(dim=0) is unbiased (divide by B-1)
    std_x = jnp.sqrt(sumsq_x / (B - 1) + 1.0e-4)
    std_y = jnp.sqrt(sumsq_y / (B - 1) + 1.0e-4)
    gamma = 1.0
    std_loss = (jnp.mean(jnp.maximum(gamma - std_x, 0.0)) / 2.0
                + jnp.mean(jnp.maximum(gamma - std_y, 0.0)) / 2.0)

    # cov = x.T @ x / (batch_size - 1): bf16 operands, f32 accumulate.
    # Off-diagonal sum-of-squares is taken from the same matmul result via a
    # mask, so diag / off-diag stay numerically consistent.
    dims = (((0,), (0,)), ((), ()))
    cov_x = jax.lax.dot_general(xc.astype(bf16), xc.astype(bf16), dims,
                                preferred_element_type=f32) / (batch_size - 1)
    cov_y = jax.lax.dot_general(yc.astype(bf16), yc.astype(bf16), dims,
                                preferred_element_type=f32) / (batch_size - 1)
    row = jax.lax.broadcasted_iota(jnp.int32, (E, E), 0)
    col = jax.lax.broadcasted_iota(jnp.int32, (E, E), 1)
    off = (row != col).astype(f32)
    # TODO(synk): at large E, accumulate sum(off-diag cov^2) tile-by-tile instead
    #             of materializing the full [E, E] covariance in VMEM.
    cov_loss = (jnp.sum(cov_x * cov_x * off)
                + jnp.sum(cov_y * cov_y * off)) / E

    # ---- temporal order prediction + BCEWithLogits --------------------------
    # logit[b] = sum_p repr_{idx[b,p]}[b] . wt_p + bt
    #          = sum_p S_{idx[b,p]}[b, p] + bt   with  S_v = r_v @ wt^T  [B, 3]
    # One [4B, R] @ [R, 3] matmul (the y-view rows are computed but unused),
    # then one-hot masking on tiny [B, 3] tiles.
    S = jnp.dot(r_all.astype(bf16), wt_ref[...].astype(bf16),
                preferred_element_type=f32)                         # [4B, 3]
    s_x = S[0:B]
    s_z = S[2 * B:3 * B]
    s_w = S[3 * B:4 * B]
    idx = idx_ref[...]                                              # [B, 3] int32
    picked = (jnp.where(idx == 0, s_x, 0.0)
              + jnp.where(idx == 1, s_z, 0.0)
              + jnp.where(idx == 2, s_w, 0.0))                      # [B, 3]
    logit = jnp.sum(picked, axis=1, keepdims=True) + bt_ref[0, 0]   # [B, 1]

    yl = lbl_ref[...]                                               # [B, 1]
    # BCEWithLogitsLoss (mean): max(z,0) - z*y + log(1 + exp(-|z|))
    t_loss = jnp.mean(jnp.maximum(logit, 0.0) - logit * yl
                      + jnp.log(1.0 + jnp.exp(-jnp.abs(logit))))

    # ---- outputs -------------------------------------------------------------
    out_ref[0] = (sim_coeff * repr_loss + temporal_coeff * t_loss
                  + std_coeff * std_loss + cov_coeff * cov_loss)
    out_ref[1] = repr_loss
    out_ref[2] = std_loss
    out_ref[3] = cov_loss
    out_ref[4] = t_loss


# ----------------------------------------------------------------------------
# Full TOVVICReg forward (streamed encoder call + fused epilogue call)
# ----------------------------------------------------------------------------
def tov_vicreg_forward(x, y, z, w, params, args, rng_key):
    B = args["batch_size"]
    Din, R = params["wb"].shape

    # torch.flatten(v, 1): metadata-only reshape — no cast, no copy, no concat.
    xf = x.reshape(B, -1)
    yf = y.reshape(B, -1)
    zf = z.reshape(B, -1)
    wf = w.reshape(B, -1)

    # ---- temporal-order shuffling (index-generation glue only) --------------
    combinations = jnp.array([[0, 1, 2], [0, 2, 1], [1, 0, 2],
                              [1, 2, 0], [2, 0, 1], [2, 1, 0]], dtype=jnp.int32)
    shuffle_labels = jax.random.randint(rng_key, (B,), 0, combinations.shape[0])
    shuffle_indexes = combinations[shuffle_labels].astype(jnp.int32)       # [B, 3]
    binary_labels = jnp.where(shuffle_labels == 0, 0.0, 1.0
                              ).reshape(-1, 1).astype(jnp.float32)         # [B, 1]

    # ---- encoder: streamed over Din ------------------------------------------
    P = 2                          # Din halves -> "parallel" axis (v7x: 2 TCs)
    assert Din % P == 0
    din_half = Din // P
    # TODO(synk): at realistic Din, size TK per generation: 2 buffers x
    #             (4*B*TK*4 + TK*R*2) bytes + the [4B, R] f32 output block must
    #             fit vmem_limit_bytes (v7x 64 MiB physical, v5e 16 MiB scoped
    #             default); if DMA is still exposed on v5e, add
    #             pipeline_mode=pl.Buffered(3) on the view BlockSpecs.
    TK = 256 if din_half % 256 == 0 else din_half
    assert din_half % TK == 0
    KC = din_half // TK

    wb = params["wb"].astype(jnp.bfloat16)          # one-time parameter cast

    in_map = lambda p, k: (0, p * KC + k)
    r_partial = pl.pallas_call(
        encoder_kernel,
        out_shape=jax.ShapeDtypeStruct((P, 4 * B, R), jnp.float32),
        grid=(P, KC),
        in_specs=[pl.BlockSpec((B, TK), in_map),                    # x chunk
                  pl.BlockSpec((B, TK), in_map),                    # y chunk
                  pl.BlockSpec((B, TK), in_map),                    # z chunk
                  pl.BlockSpec((B, TK), in_map),                    # w chunk
                  pl.BlockSpec((TK, R), lambda p, k: (p * KC + k, 0))],
        out_specs=pl.BlockSpec((None, 4 * B, R), lambda p, k: (p, 0, 0)),
        compiler_params=pltpu.CompilerParams(
            dimension_semantics=("parallel", "arbitrary"),
            vmem_limit_bytes=32 * 1024 * 1024),
    )(xf, yf, zf, wf, wb)

    # ---- epilogue: combine partials + projector + losses ---------------------
    vmem = pl.BlockSpec(memory_space=pltpu.MemorySpace.VMEM)
    smem = pl.BlockSpec(memory_space=pltpu.MemorySpace.SMEM)

    kernel = functools.partial(
        epilogue_kernel,
        batch_size=B,
        sim_coeff=args["sim_coeff"], std_coeff=args["std_coeff"],
        cov_coeff=args["cov_coeff"], temporal_coeff=args["temporal_coeff"])

    losses = pl.pallas_call(
        kernel,
        out_shape=jax.ShapeDtypeStruct((5,), jnp.float32),
        in_specs=[vmem,                                   # r_partial [P,4B,R]
                  vmem, vmem, vmem, vmem, vmem, vmem,     # bb,w1,b1,g1,be1,w2
                  vmem,                                   # wt^T [R,3]
                  smem,                                   # bt (scalar)
                  vmem, vmem],                            # idx, labels
        out_specs=smem,
    )(r_partial,
      params["bb"],
      params["w1"].astype(jnp.bfloat16), params["b1"],
      params["g1"], params["be1"],
      params["w2"].astype(jnp.bfloat16),
      params["wt"].T,                                     # [R, 3]
      params["bt"],
      shuffle_indexes, binary_labels)

    loss = losses[0]
    log = {"temporal_loss": losses[4], "invariance_loss": losses[1],
           "variance_loss": losses[2], "covariance_loss": losses[3]}
    return loss, log


# ----------------------------------------------------------------------------
# main
# ----------------------------------------------------------------------------
if __name__ == "__main__":
    B, C, H, W = 8, 4, 16, 16          # small image batch
    D_IN = C * H * W                   # 1024 after flatten
    R = 32                             # representation_size (backbone features)
    H1 = 64                            # projector hidden (args.mlp = "64-32")
    E = 32                             # embedding_size

    args = dict(batch_size=B, sim_coeff=25.0, std_coeff=25.0,
                cov_coeff=1.0, temporal_coeff=1.0)

    key = jax.random.PRNGKey(0)
    ks = jax.random.split(key, 10)

    params = {
        # backbone (substitute linear encoder)
        "wb": jax.random.normal(ks[0], (D_IN, R), jnp.float32) * 0.02,
        "bb": jnp.zeros((1, R), jnp.float32),
        # projector layer 1 (Linear + BN params)
        "w1": jax.random.normal(ks[1], (R, H1), jnp.float32) * 0.1,
        "b1": jax.random.normal(ks[2], (1, H1), jnp.float32) * 0.01,
        "g1": jnp.ones((1, H1), jnp.float32),     # BN weight
        "be1": jnp.zeros((1, H1), jnp.float32),   # BN bias
        # projector final linear (no bias)
        "w2": jax.random.normal(ks[3], (H1, E), jnp.float32) * 0.1,
        # temporal order predictor: Linear(3R, 1), stored as [3, R] rows
        "wt": jax.random.normal(ks[4], (3, R), jnp.float32) * 0.05,
        "bt": jnp.zeros((1, 1), jnp.float32),
    }

    x = jax.random.normal(ks[5], (B, C, H, W), jnp.float32)
    y = jax.random.normal(ks[6], (B, C, H, W), jnp.float32)
    z = jax.random.normal(ks[7], (B, C, H, W), jnp.float32)
    w = jax.random.normal(ks[8], (B, C, H, W), jnp.float32)

    loss, log = tov_vicreg_forward(x, y, z, w, params, args, ks[9])
    loss = jax.block_until_ready(loss)
    assert jnp.isfinite(loss)
    print("KERNEL_OK")
</pallas_src>

<mosaic_0001>
module attributes {stable_mosaic.version = 11 : i64} {
  func.func @encoder_kernel(%arg0: i32, %arg1: i32, %arg2: memref<8x256xf32, #tpu.memory_space<vmem>>, %arg3: memref<8x256xf32, #tpu.memory_space<vmem>>, %arg4: memref<8x256xf32, #tpu.memory_space<vmem>>, %arg5: memref<8x256xf32, #tpu.memory_space<vmem>>, %arg6: memref<256x32xbf16, #tpu.memory_space<vmem>>, %arg7: memref<1x32x32xf32, #tpu.memory_space<vmem>>) attributes {dimension_semantics = [#tpu.dimension_semantics<parallel>, #tpu.dimension_semantics<arbitrary>], iteration_bounds = array<i64: 2, 2>, scalar_prefetch = 0 : i64, scratch_operands = 0 : i64, tpu.core_type = #tpu.core_type<tc>, window_params = [{transform_indices = @transform_0, window_bounds = array<i64: 8, 256>}, {transform_indices = @transform_1, window_bounds = array<i64: 8, 256>}, {transform_indices = @transform_2, window_bounds = array<i64: 8, 256>}, {transform_indices = @transform_3, window_bounds = array<i64: 8, 256>}, {transform_indices = @transform_4, window_bounds = array<i64: 256, 32>}, {transform_indices = @transform_5, window_bounds = array<i64: 1, 32, 32>}]} {
    %c0_i32 = arith.constant 0 : i32
    %0 = arith.cmpi eq, %arg1, %c0_i32 : i32
    %1 = arith.extui %0 : i1 to i32
    %c0_i32_0 = arith.constant 0 : i32
    %2 = arith.cmpi ne, %1, %c0_i32_0 : i32
    scf.if %2 {
      %cst_16 = arith.constant 0.000000e+00 : f32
      %17 = vector.broadcast %cst_16 : f32 to vector<32x32xf32>
      %c0_17 = arith.constant 0 : index
      %c0_18 = arith.constant 0 : index
      %c0_19 = arith.constant 0 : index
      %18 = vector.load %arg7[%c0_17, %c0_18, %c0_19] : memref<1x32x32xf32, #tpu.memory_space<vmem>>, vector<1x32x32xf32>
      %19 = vector.shape_cast %18 : vector<1x32x32xf32> to vector<32x32xf32>
      %20 = vector.shape_cast %17 : vector<32x32xf32> to vector<1x32x32xf32>
      tpu.vector_store %arg7[%c0_17, %c0_18, %c0_19], %20 {strides = array<i32>} : memref<1x32x32xf32, #tpu.memory_space<vmem>>, vector<1x32x32xf32>,
    } else {
    }
    %c0 = arith.constant 0 : index
    %c0_1 = arith.constant 0 : index
    %3 = vector.load %arg2[%c0, %c0_1] : memref<8x256xf32, #tpu.memory_space<vmem>>, vector<8x256xf32>
    %c0_2 = arith.constant 0 : index
    %c0_3 = arith.constant 0 : index
    %4 = vector.load %arg3[%c0_2, %c0_3] : memref<8x256xf32, #tpu.memory_space<vmem>>, vector<8x256xf32>
    %c0_4 = arith.constant 0 : index
    %c0_5 = arith.constant 0 : index
    %5 = vector.load %arg4[%c0_4, %c0_5] : memref<8x256xf32, #tpu.memory_space<vmem>>, vector<8x256xf32>
    %c0_6 = arith.constant 0 : index
    %c0_7 = arith.constant 0 : index
    %6 = vector.load %arg5[%c0_6, %c0_7] : memref<8x256xf32, #tpu.memory_space<vmem>>, vector<8x256xf32>
    %7 = tpu.concatenate %3, %4, %5, %6 in 0 : vector<8x256xf32>, vector<8x256xf32>, vector<8x256xf32>, vector<8x256xf32> -> vector<32x256xf32>
    %8 = arith.truncf %7 : vector<32x256xf32> to vector<32x256xbf16>
    %c0_8 = arith.constant 0 : index
    %c0_9 = arith.constant 0 : index
    %c0_10 = arith.constant 0 : index
    %9 = vector.load %arg7[%c0_8, %c0_9, %c0_10] : memref<1x32x32xf32, #tpu.memory_space<vmem>>, vector<1x32x32xf32>
    %10 = vector.shape_cast %9 : vector<1x32x32xf32> to vector<32x32xf32>
    %c0_11 = arith.constant 0 : index
    %c0_12 = arith.constant 0 : index
    %11 = vector.load %arg6[%c0_11, %c0_12] : memref<256x32xbf16, #tpu.memory_space<vmem>>, vector<256x32xbf16>
    %cst = arith.constant dense<0.000000e+00> : vector<32x32xf32>
    %12 = tpu.matmul %8, %11, %cst {dimension_numbers = #tpu.dot_dimension_numbers<[1], [0], [0], [1], [0, 0, 1, 1], [], []>} : vector<32x256xbf16>, vector<256x32xbf16>, vector<32x32xf32> -> vector<32x32xf32>
    %13 = arith.addf %10, %12 : vector<32x32xf32>
    %c0_13 = arith.constant 0 : index
    %c0_14 = arith.constant 0 : index
    %c0_15 = arith.constant 0 : index
    %14 = vector.load %arg7[%c0_13, %c0_14, %c0_15] : memref<1x32x32xf32, #tpu.memory_space<vmem>>, vector<1x32x32xf32>
    %15 = vector.shape_cast %14 : vector<1x32x32xf32> to vector<32x32xf32>
    %16 = vector.shape_cast %13 : vector<32x32xf32> to vector<1x32x32xf32>
    tpu.vector_store %arg7[%c0_13, %c0_14, %c0_15], %16 {strides = array<i32>} : memref<1x32x32xf32, #tpu.memory_space<vmem>>, vector<1x32x32xf32>,
    return
  }
  func.func @transform_0(%arg0: i32, %arg1: i32) -> (i32, i32) {
    %c2_i32 = arith.constant 2 : i32
    %0 = arith.muli %arg0, %c2_i32 : i32
    %1 = arith.addi %0, %arg1 : i32
    %c0_i32 = arith.constant 0 : i32
    %c0_i32_0 = arith.constant 0 : i32
    return %c0_i32, %1 : i32, i32
  }
  func.func @transform_1(%arg0: i32, %arg1: i32) -> (i32, i32) {
    %c2_i32 = arith.constant 2 : i32
    %0 = arith.muli %arg0, %c2_i32 : i32
    %1 = arith.addi %0, %arg1 : i32
    %c0_i32 = arith.constant 0 : i32
    %c0_i32_0 = arith.constant 0 : i32
    return %c0_i32, %1 : i32, i32
  }
  func.func @transform_2(%arg0: i32, %arg1: i32) -> (i32, i32) {
    %c2_i32 = arith.constant 2 : i32
    %0 = arith.muli %arg0, %c2_i32 : i32
    %1 = arith.addi %0, %arg1 : i32
    %c0_i32 = arith.constant 0 : i32
    %c0_i32_0 = arith.constant 0 : i32
    return %c0_i32, %1 : i32, i32
  }
  func.func @transform_3(%arg0: i32, %arg1: i32) -> (i32, i32) {
    %c2_i32 = arith.constant 2 : i32
    %0 = arith.muli %arg0, %c2_i32 : i32
    %1 = arith.addi %0, %arg1 : i32
    %c0_i32 = arith.constant 0 : i32
    %c0_i32_0 = arith.constant 0 : i32
    return %c0_i32, %1 : i32, i32
  }
  func.func @transform_4(%arg0: i32, %arg1: i32) -> (i32, i32) {
    %c2_i32 = arith.constant 2 : i32
    %0 = arith.muli %arg0, %c2_i32 : i32
    %1 = arith.addi %0, %arg1 : i32
    %c0_i32 = arith.constant 0 : i32
    %c0_i32_0 = arith.constant 0 : i32
    return %1, %c0_i32 : i32, i32
  }
  func.func @transform_5(%arg0: i32, %arg1: i32) -> (i32, i32, i32) {
    %c0_i32 = arith.constant 0 : i32
    %c0_i32_0 = arith.constant 0 : i32
    %c0_i32_1 = arith.constant 0 : i32
    return %arg0, %c0_i32, %c0_i32_0 : i32, i32, i32
  }
}

</mosaic_0001>

<llo_original>
// kernel: tpu_custom_call.1
$region0: #{tpu_custom_call.1}
  #allocation0 [shape = 'u32[]', space=smem, size = 0x4, offset = 0x4, fixed_abs, tag = 'smem constant byte address 0x4 - core index']
  #allocation1 [shape = 'u32[144,128]{1,0:T(1,128)}', space=vmem, size = 0x12000, scoped, tag = 'internal scratch']
  %s0 = inlined_call_operand.vmem [shape: f32[8,1024], index: 0, kind: input, shape index: {}]
  %s1 = inlined_call_operand.vmem [shape: f32[8,1024], index: 1, kind: input, shape index: {}]
  %s2 = inlined_call_operand.vmem [shape: f32[8,1024], index: 2, kind: input, shape index: {}]
  %s3 = inlined_call_operand.vmem [shape: f32[8,1024], index: 3, kind: input, shape index: {}]
  %s4 = inlined_call_operand.vmem [shape: bf16[1024,32], index: 4, kind: input, shape index: {}]
  %s5 = inlined_call_operand.hbm [shape: f32[2,32,32], index: 5, kind: output, shape index: {}]
  %s6 = sld [smem:[#allocation0]]
  $region57: #{tpu_custom_call.1} parent=0
    _
  %s8 = ssub.s32 1, %s6
  %s9 = scalar_select 0, %s8, %s6
  $region1: #{tpu_custom_call.1} parent=0
    #allocation2 [shape = 'u8[32768]{0}', space=vmem, size = 0x8000, scoped, tag = 'output window, operand 0']
    #allocation3 [shape = 's32[2]{0}', space=sflag, size = 0x8, scoped, tag = 'scoped memory for tpu_custom_call.1']
    %10 = vsyncpa [#allocation3], 0
    %s11 = scalar_lea.sflag [#allocation3], 1
    %12 = vsyncpa %s11, 0
    loop: start=0, step=1, limit=6
    $region2: #{tpu_custom_call.1} parent=1 // loop_pre_header
      _
    $region3: #{tpu_custom_call.1} parent=1 // loop_header
      %s14 = sphi 0, %s18
      %p15 = scmp.ge.s32.totalorder %s14, 6
      %s21 = sphi 0, %s33
      %s22 = sphi 0, %s29
      %s23 = sphi 0, %s21
      %s24 = sphi 0, %s22
      %s25 = sphi 0, %s23
      %s26 = sphi 0, %s24
      %s40 = sphi 0, %s42
      %s43 = sphi 0, %s40
      %s44 = sphi 0, %s43
      %s60 = sphi 0, %s44
      %s70 = sphi 0, %s72
      %s73 = sphi 0, %s70
      %s74 = sphi 0, %s73
      %s90 = sphi 0, %s74
      %s100 = sphi 0, %s102
      %s103 = sphi 0, %s100
      %s104 = sphi 0, %s103
      %s120 = sphi 0, %s104
      %s130 = sphi 0, %s132
      %s133 = sphi 0, %s130
      %s134 = sphi 0, %s133
      %s150 = sphi 0, %s134
      %s160 = sphi 0, %s162
      %s163 = sphi 0, %s160
      %s164 = sphi 0, %s163
      %s180 = sphi 0, %s164
      %s186 = sphi 0, %s188
      %s189 = sphi 0, %s186
      %s190 = sphi 0, %s189
      %s206 = sphi 0, %s190
    $region4: #{tpu_custom_call.1} parent=1 // loop_header_branch
      %17 = sbr.rel (%p15) target = $region8
    $region5: #{tpu_custom_call.1} parent=1 // loop_body
      %s19 = ssub.s32 %s14, 1
      %s20 = ssub.s32 %s14, 2
      %s27 = sadd.s32 1, %s22
      %p28 = scmp.ge.s32.totalorder %s27, 2
      %s29 = scalar_select %p28, 0, %s27
      %s30 = sadd.s32 1, %s21
      %s31 = scalar_select %p28, %s30, %s21
      %p32 = scmp.ge.s32.totalorder %s31, 2
      %s33 = scalar_select %p32, 0, %s31
      %s34 = smul.u32 %s21, 2
      %s35 = sadd.s32 %s34, %s22
      %s36 = smul.u32 %s33, 2
      %s37 = sadd.s32 %s36, %s29
      %s38 = ssub.s32 %s35, %s37
      %p39 = scmp.eq.s32.totalorder %s38, 0
      %s41 = sadd.s32 %s40, 1
      %s42 = scalar_select %p39, %s40, %s41
      %p45 = pneg %p39
      %p46 = scmp.eq.s32.totalorder %s14, 3
      %p47 = por %p45, %p46
      %p48 = scmp.ne.s32.totalorder %s40, %s43
      %p49 = scmp.eq.s32.totalorder %s14, 0
      %p50 = por %p48, %p49
      %p51 = scmp.ne.s32.totalorder %s40, %s43
      %p52 = scmp.eq.s32.totalorder %s19, 3
      %p53 = por %p51, %p52
      %p54 = scmp.ne.s32.totalorder %s43, %s44
      %p55 = scmp.eq.s32.totalorder %s19, 0
      %p56 = por %p54, %p55
      %p57 = scmp.ne.s32.totalorder %s43, %s44
      %p58 = scmp.eq.s32.totalorder %s20, 3
      %p59 = por %p57, %p58
      %p61 = scmp.ne.s32.totalorder %s44, %s60
      %p62 = scmp.eq.s32.totalorder %s20, 0
      %p63 = por %p61, %p62
      %s64 = smul.u32 %s21, 2
      %s65 = sadd.s32 %s64, %s22
      %s66 = smul.u32 %s33, 2
      %s67 = sadd.s32 %s66, %s29
      %s68 = ssub.s32 %s65, %s67
      %p69 = scmp.eq.s32.totalorder %s68, 0
      %s71 = sadd.s32 %s70, 1
      %s72 = scalar_select %p69, %s70, %s71
      %p75 = pneg %p69
      %p76 = scmp.eq.s32.totalorder %s14, 3
      %p77 = por %p75, %p76
      %p78 = scmp.ne.s32.totalorder %s70, %s73
      %p79 = scmp.eq.s32.totalorder %s14, 0
      %p80 = por %p78, %p79
      %p81 = scmp.ne.s32.totalorder %s70, %s73
      %p82 = scmp.eq.s32.totalorder %s19, 3
      %p83 = por %p81, %p82
      %p84 = scmp.ne.s32.totalorder %s73, %s74
      %p85 = scmp.eq.s32.totalorder %s19, 0
      %p86 = por %p84, %p85
      %p87 = scmp.ne.s32.totalorder %s73, %s74
      %p88 = scmp.eq.s32.totalorder %s20, 3
      %p89 = por %p87, %p88
      %p91 = scmp.ne.s32.totalorder %s74, %s90
      %p92 = scmp.eq.s32.totalorder %s20, 0
      %p93 = por %p91, %p92
      %s94 = smul.u32 %s21, 2
      %s95 = sadd.s32 %s94, %s22
      %s96 = smul.u32 %s33, 2
      %s97 = sadd.s32 %s96, %s29
      %s98 = ssub.s32 %s95, %s97
      %p99 = scmp.eq.s32.totalorder %s98, 0
      %s101 = sadd.s32 %s100, 1
      %s102 = scalar_select %p99, %s100, %s101
      %p105 = pneg %p99
      %p106 = scmp.eq.s32.totalorder %s14, 3
      %p107 = por %p105, %p106
      %p108 = scmp.ne.s32.totalorder %s100, %s103
      %p109 = scmp.eq.s32.totalorder %s14, 0
      %p110 = por %p108, %p109
      %p111 = scmp.ne.s32.totalorder %s100, %s103
      %p112 = scmp.eq.s32.totalorder %s19, 3
      %p113 = por %p111, %p112
      %p114 = scmp.ne.s32.totalorder %s103, %s104
      %p115 = scmp.eq.s32.totalorder %s19, 0
      %p116 = por %p114, %p115
      %p117 = scmp.ne.s32.totalorder %s103, %s104
      %p118 = scmp.eq.s32.totalorder %s20, 3
      %p119 = por %p117, %p118
      %p121 = scmp.ne.s32.totalorder %s104, %s120
      %p122 = scmp.eq.s32.totalorder %s20, 0
      %p123 = por %p121, %p122
      %s124 = smul.u32 %s21, 2
      %s125 = sadd.s32 %s124, %s22
      %s126 = smul.u32 %s33, 2
      %s127 = sadd.s32 %s126, %s29
      %s128 = ssub.s32 %s125, %s127
      %p129 = scmp.eq.s32.totalorder %s128, 0
      %s131 = sadd.s32 %s130, 1
      %s132 = scalar_select %p129, %s130, %s131
      %p135 = pneg %p129
      %p136 = scmp.eq.s32.totalorder %s14, 3
      %p137 = por %p135, %p136
      %p138 = scmp.ne.s32.totalorder %s130, %s133
      %p139 = scmp.eq.s32.totalorder %s14, 0
      %p140 = por %p138, %p139
      %p141 = scmp.ne.s32.totalorder %s130, %s133
      %p142 = scmp.eq.s32.totalorder %s19, 3
      %p143 = por %p141, %p142
      %p144 = scmp.ne.s32.totalorder %s133, %s134
      %p145 = scmp.eq.s32.totalorder %s19, 0
      %p146 = por %p144, %p145
      %p147 = scmp.ne.s32.totalorder %s133, %s134
      %p148 = scmp.eq.s32.totalorder %s20, 3
      %p149 = por %p147, %p148
      %p151 = scmp.ne.s32.totalorder %s134, %s150
      %p152 = scmp.eq.s32.totalorder %s20, 0
      %p153 = por %p151, %p152
      %s154 = smul.u32 %s21, 2
      %s155 = sadd.s32 %s154, %s22
      %s156 = smul.u32 %s33, 2
      %s157 = sadd.s32 %s156, %s29
      %s158 = ssub.s32 %s155, %s157
      %p159 = scmp.eq.s32.totalorder %s158, 0
      %s161 = sadd.s32 %s160, 1
      %s162 = scalar_select %p159, %s160, %s161
      %p165 = pneg %p159
      %p166 = scmp.eq.s32.totalorder %s14, 3
      %p167 = por %p165, %p166
      %p168 = scmp.ne.s32.totalorder %s160, %s163
      %p169 = scmp.eq.s32.totalorder %s14, 0
      %p170 = por %p168, %p169
      %p171 = scmp.ne.s32.totalorder %s160, %s163
      %p172 = scmp.eq.s32.totalorder %s19, 3
      %p173 = por %p171, %p172
      %p174 = scmp.ne.s32.totalorder %s163, %s164
      %p175 = scmp.eq.s32.totalorder %s19, 0
      %p176 = por %p174, %p175
      %p177 = scmp.ne.s32.totalorder %s163, %s164
      %p178 = scmp.eq.s32.totalorder %s20, 3
      %p179 = por %p177, %p178
      %p181 = scmp.ne.s32.totalorder %s164, %s180
      %p182 = scmp.eq.s32.totalorder %s20, 0
      %p183 = por %p181, %p182
      %s184 = ssub.s32 %s21, %s33
      %p185 = scmp.eq.s32.totalorder %s184, 0
      %s187 = sadd.s32 %s186, 1
      %s188 = scalar_select %p185, %s186, %s187
      %p191 = pneg %p185
      %p192 = scmp.eq.s32.totalorder %s14, 3
      %p193 = por %p191, %p192
      %p194 = scmp.ne.s32.totalorder %s186, %s189
      %p195 = scmp.eq.s32.totalorder %s14, 0
      %p196 = por %p194, %p195
      %p197 = scmp.ne.s32.totalorder %s186, %s189
      %p198 = scmp.eq.s32.totalorder %s19, 3
      %p199 = por %p197, %p198
      %p200 = scmp.ne.s32.totalorder %s189, %s190
      %p201 = scmp.eq.s32.totalorder %s19, 0
      %p202 = por %p200, %p201
      %p203 = scmp.ne.s32.totalorder %s189, %s190
      %p204 = scmp.eq.s32.totalorder %s20, 3
      %p205 = por %p203, %p204
      %p207 = scmp.ne.s32.totalorder %s190, %s206
      %p208 = scmp.eq.s32.totalorder %s20, 0
      %p209 = por %p207, %p208
      %p210 = scmp.le.s32.totalorder 1, %s14
      %p211 = scmp.lt.s32.totalorder %s14, 5
      %p212 = pnand %p210, %p211
      %p213 = pneg %p212
      // Predicated region
      $region9: #{tpu_custom_call.1} parent=5 // pred_check
        _
      $region10: #{tpu_custom_call.1} parent=5 // pred_check_branch
        %215 = sbr.rel (%p212) target = $region12
      $region11: #{tpu_custom_call.1} parent=5 // pred_region
        %s216 = ssub.s32 %s14, 1
      $region12: #{tpu_custom_call.1} parent=5 // pred_fallthru
        _
      %p217 = scmp.lt.s32.totalorder %s14, 4
      // Predicated region
      $region13: #{tpu_custom_call.1} parent=5 // pred_check
        %p218 = pneg %p217
      $region14: #{tpu_custom_call.1} parent=5 // pred_check_branch
        %220 = sbr.rel (%p218) target = $region16
      $region15: #{tpu_custom_call.1} parent=5 // pred_region
        // Predicated region
        $region17: #{tpu_custom_call.1} parent=15 // pred_check
          %p221 = pneg %p50
        $region18: #{tpu_custom_call.1} parent=15 // pred_check_branch
          %223 = sbr.rel (%p221) target = $region20
        $region19: #{tpu_custom_call.1} parent=15 // pred_region
          %s224 = smul.u32 %s21, 2
          %s225 = sadd.s32 %s224, %s22
          %s226 = smul.u32 2, %s225
          %p227 = scmp.lt.s32.totalorder %s226, 7
          %s228 = scalar_select %p227, %s226, 7
          %s229 = smul.addr %s228, 8
          %s230 = scalar_lea.vmem %s0, %s229
          %s231 = smul.u32 %s21, 2
          %s232 = sadd.s32 %s231, %s22
          %s233 = smul.u32 2, %s232
        $region20: #{tpu_custom_call.1} parent=15 // pred_fallthru
          _
        // Predicated region
        $region21: #{tpu_custom_call.1} parent=15 // pred_check
          %p234 = pneg %p80
        $region22: #{tpu_custom_call.1} parent=15 // pred_check_branch
          %236 = sbr.rel (%p234) target = $region24
        $region23: #{tpu_custom_call.1} parent=15 // pred_region
          %s237 = smul.u32 %s21, 2
          %s238 = sadd.s32 %s237, %s22
          %s239 = smul.u32 2, %s238
          %p240 = scmp.lt.s32.totalorder %s239, 7
          %s241 = scalar_select %p240, %s239, 7
          %s242 = smul.addr %s241, 8
          %s243 = scalar_lea.vmem %s1, %s242
          %s244 = smul.u32 %s21, 2
          %s245 = sadd.s32 %s244, %s22
          %s246 = smul.u32 2, %s245
        $region24: #{tpu_custom_call.1} parent=15 // pred_fallthru
          _
        // Predicated region
        $region25: #{tpu_custom_call.1} parent=15 // pred_check
          %p247 = pneg %p110
        $region26: #{tpu_custom_call.1} parent=15 // pred_check_branch
          %249 = sbr.rel (%p247) target = $region28
        $region27: #{tpu_custom_call.1} parent=15 // pred_region
          %s250 = smul.u32 %s21, 2
          %s251 = sadd.s32 %s250, %s22
          %s252 = smul.u32 2, %s251
          %p253 = scmp.lt.s32.totalorder %s252, 7
          %s254 = scalar_select %p253, %s252, 7
          %s255 = smul.addr %s254, 8
          %s256 = scalar_lea.vmem %s2, %s255
          %s257 = smul.u32 %s21, 2
          %s258 = sadd.s32 %s257, %s22
          %s259 = smul.u32 2, %s258
        $region28: #{tpu_custom_call.1} parent=15 // pred_fallthru
          _
        // Predicated region
        $region29: #{tpu_custom_call.1} parent=15 // pred_check
          %p260 = pneg %p140
        $region30: #{tpu_custom_call.1} parent=15 // pred_check_branch
          %262 = sbr.rel (%p260) target = $region32
        $region31: #{tpu_custom_call.1} parent=15 // pred_region
          %s263 = smul.u32 %s21, 2
          %s264 = sadd.s32 %s263, %s22
          %s265 = smul.u32 2, %s264
          %p266 = scmp.lt.s32.totalorder %s265, 7
          %s267 = scalar_select %p266, %s265, 7
          %s268 = smul.addr %s267, 8
          %s269 = scalar_lea.vmem %s3, %s268
          %s270 = smul.u32 %s21, 2
          %s271 = sadd.s32 %s270, %s22
          %s272 = smul.u32 2, %s271
        $region32: #{tpu_custom_call.1} parent=15 // pred_fallthru
          _
        // Predicated region
        $region33: #{tpu_custom_call.1} parent=15 // pred_check
          %p273 = pneg %p170
        $region34: #{tpu_custom_call.1} parent=15 // pred_check_branch
          %275 = sbr.rel (%p273) target = $region36
        $region35: #{tpu_custom_call.1} parent=15 // pred_region
          %s276 = smul.u32 %s21, 2
          %s277 = sadd.s32 %s276, %s22
          %s278 = smul.u32 32, %s277
          %p279 = scmp.lt.s32.totalorder %s278, 127
          %s280 = scalar_select %p279, %s278, 127
          %s281 = smul.addr %s280, 4
          %s282 = scalar_lea.vmem %s4, %s281
          %s283 = smul.u32 %s21, 2
          %s284 = sadd.s32 %s283, %s22
          %s285 = smul.u32 32, %s284
        $region36: #{tpu_custom_call.1} parent=15 // pred_fallthru
          _
      $region16: #{tpu_custom_call.1} parent=5 // pred_fallthru
        _
      %p286 = scmp.le.s32.totalorder 1, %s14
      %p287 = scmp.lt.s32.totalorder %s14, 5
      %p288 = pnand %p286, %p287
      %p289 = pneg %p288
      // Predicated region
      $region37: #{tpu_custom_call.1} parent=5 // pred_check
        _
      $region38: #{tpu_custom_call.1} parent=5 // pred_check_branch
        %291 = sbr.rel (%p288) target = $region40
      $region39: #{tpu_custom_call.1} parent=5 // pred_region
        %s292 = ssub.s32 %s14, 1
        %s293 = smul.u32 %s23, 2
        %s294 = sadd.s32 %s293, %s24
        %s295 = smul.u32 2, %s294
        %p296 = scmp.lt.s32.totalorder %s295, 7
        %s297 = scalar_select %p296, %s295, 7
        %s298 = smul.addr %s297, 8
        %s299 = scalar_lea.vmem %s0, %s298
        %p300 = pneg %p56
        %p301 = pneg %p53
        %s302 = smul.u32 %s23, 2
        %s303 = sadd.s32 %s302, %s24
        %s304 = smul.u32 2, %s303
        %p305 = scmp.lt.s32.totalorder %s304, 7
        %s306 = scalar_select %p305, %s304, 7
        %s307 = smul.addr %s306, 8
        %s308 = scalar_lea.vmem %s1, %s307
        %p309 = pneg %p86
        %p310 = pneg %p83
        %s311 = smul.u32 %s23, 2
        %s312 = sadd.s32 %s311, %s24
        %s313 = smul.u32 2, %s312
        %p314 = scmp.lt.s32.totalorder %s313, 7
        %s315 = scalar_select %p314, %s313, 7
        %s316 = smul.addr %s315, 8
        %s317 = scalar_lea.vmem %s2, %s316
        %p318 = pneg %p116
        %p319 = pneg %p113
        %s320 = smul.u32 %s23, 2
        %s321 = sadd.s32 %s320, %s24
        %s322 = smul.u32 2, %s321
        %p323 = scmp.lt.s32.totalorder %s322, 7
        %s324 = scalar_select %p323, %s322, 7
        %s325 = smul.addr %s324, 8
        %s326 = scalar_lea.vmem %s3, %s325
        %p327 = pneg %p146
        %p328 = pneg %p143
        %s329 = smul.u32 %s23, 2
        %s330 = sadd.s32 %s329, %s24
        %s331 = smul.u32 32, %s330
        %p332 = scmp.lt.s32.totalorder %s331, 127
        %s333 = scalar_select %p332, %s331, 127
        %s334 = smul.addr %s333, 4
        %s335 = scalar_lea.vmem %s4, %s334
        %p336 = pneg %p176
        %p337 = pneg %p173
        %p338 = pneg %p202
        %p339 = pneg %p199
        %s340 = sand.u32 %s189, 1
        %s341 = scalar_lea.sflag [#allocation3], %s340
        %s342 = sand.u32 %s189, 1
        %s343 = smul.addr %s342, 32
        %s344 = scalar_lea.vmem [#allocation2], %s343
        %s345 = smul.u32 %s23, 2
        %s346 = sadd.s32 %s345, %s24
        %s347 = smul.u32 2, %s346
        %p348 = scmp.lt.s32.totalorder %s347, 7
        %s349 = scalar_select %p348, %s347, 7
        %s350 = smul.addr %s349, 8
        %s351 = scalar_lea.vmem %s0, %s350
        %s352 = smul.u32 %s23, 2
        %s353 = sadd.s32 %s352, %s24
        %s354 = smul.u32 2, %s353
        %s355 = smul.u32 %s23, 2
        %s356 = sadd.s32 %s355, %s24
        %s357 = smul.u32 2, %s356
        %p358 = scmp.lt.s32.totalorder %s357, 7
        %s359 = scalar_select %p358, %s357, 7
        %s360 = smul.addr %s359, 8
        %s361 = scalar_lea.vmem %s1, %s360
        %s362 = smul.u32 %s23, 2
        %s363 = sadd.s32 %s362, %s24
        %s364 = smul.u32 2, %s363
        %s365 = smul.u32 %s23, 2
        %s366 = sadd.s32 %s365, %s24
        %s367 = smul.u32 2, %s366
        %p368 = scmp.lt.s32.totalorder %s367, 7
        %s369 = scalar_select %p368, %s367, 7
        %s370 = smul.addr %s369, 8
        %s371 = scalar_lea.vmem %s2, %s370
        %s372 = smul.u32 %s23, 2
        %s373 = sadd.s32 %s372, %s24
        %s374 = smul.u32 2, %s373
        %s375 = smul.u32 %s23, 2
        %s376 = sadd.s32 %s375, %s24
        %s377 = smul.u32 2, %s376
        %p378 = scmp.lt.s32.totalorder %s377, 7
        %s379 = scalar_select %p378, %s377, 7
        %s380 = smul.addr %s379, 8
        %s381 = scalar_lea.vmem %s3, %s380
        %s382 = smul.u32 %s23, 2
        %s383 = sadd.s32 %s382, %s24
        %s384 = smul.u32 2, %s383
        %s385 = smul.u32 %s23, 2
        %s386 = sadd.s32 %s385, %s24
        %s387 = smul.u32 32, %s386
        %p388 = scmp.lt.s32.totalorder %s387, 127
        %s389 = scalar_select %p388, %s387, 127
        %s390 = smul.addr %s389, 4
        %s391 = scalar_lea.vmem %s4, %s390
        %s392 = smul.u32 %s23, 2
        %s393 = sadd.s32 %s392, %s24
        %s394 = smul.u32 32, %s393
        %p396 = scmp.eq.s32.totalorder %s24, 0
        // Predicated region
        $region41: #{tpu_custom_call.1} parent=39 // pred_check
          %p397 = pneg %p396
        $region42: #{tpu_custom_call.1} parent=39 // pred_check_branch
          %399 = sbr.rel (%p397) target = $region44
        $region43: #{tpu_custom_call.1} parent=39 // pred_region
          %vm400 = vcmask 261120
          %401 = vst.msk [vmem:[%s344] sm:$0xff] %vm400, 0.0
          %402 = vst.msk [vmem:[%s344 + $0x8] sm:$0xff] %vm400, 0.0
          %403 = vst.msk [vmem:[%s344 + $0x10] sm:$0xff] %vm400, 0.0
          %404 = vst.msk [vmem:[%s344 + $0x18] sm:$0xff] %vm400, 0.0
        $region44: #{tpu_custom_call.1} parent=39 // pred_fallthru
          _
        %v405 = vld [vmem:[%s351] sm:$0xff]
        %v406 = vld [vmem:[%s351 + $0x8] sm:$0xff]
        %v407 = vld [vmem:[%s361] sm:$0xff]
        %v408 = vld [vmem:[%s361 + $0x8] sm:$0xff]
        %v409 = vld [vmem:[%s371] sm:$0xff]
        %v410 = vld [vmem:[%s371 + $0x8] sm:$0xff]
        %v411 = vld [vmem:[%s381] sm:$0xff]
        %v412 = vld [vmem:[%s381 + $0x8] sm:$0xff]
        %v413 = vpack.c.bf16 %v407, %v405
        %v414 = vpack.c.bf16 %v408, %v406
        %v415 = vpack.c.bf16 %v411, %v409
        %v416 = vpack.c.bf16 %v412, %v410
        %v417 = vld [vmem:[%s344] sm:$0xff]
        %v418 = vld [vmem:[%s344 + $0x8] sm:$0xff]
        %v419 = vld [vmem:[%s344 + $0x10] sm:$0xff]
        %v420 = vld [vmem:[%s344 + $0x18] sm:$0xff]
        %v421 = vld [vmem:[%s391] sm:$0xf]
        %v422 = vld [vmem:[%s391 + $0x4] sm:$0xf]
        %v423 = vld [vmem:[%s391 + $0x8] sm:$0xf]
        %v424 = vld [vmem:[%s391 + $0xc] sm:$0xf]
        %v425 = vld [vmem:[%s391 + $0x10] sm:$0xf]
        %v426 = vld [vmem:[%s391 + $0x14] sm:$0xf]
        %v427 = vld [vmem:[%s391 + $0x18] sm:$0xf]
        %v428 = vld [vmem:[%s391 + $0x1c] sm:$0xf]
        %v429 = vld [vmem:[%s391 + $0x20] sm:$0xf]
        %v430 = vld [vmem:[%s391 + $0x24] sm:$0xf]
        %v431 = vld [vmem:[%s391 + $0x28] sm:$0xf]
        %v432 = vld [vmem:[%s391 + $0x2c] sm:$0xf]
        %v433 = vld [vmem:[%s391 + $0x30] sm:$0xf]
        %v434 = vld [vmem:[%s391 + $0x34] sm:$0xf]
        %v435 = vld [vmem:[%s391 + $0x38] sm:$0xf]
        %v436 = vld [vmem:[%s391 + $0x3c] sm:$0xf]
        %v437 = vld [vmem:[%s391 + $0x40] sm:$0xf]
        %v438 = vld [vmem:[%s391 + $0x44] sm:$0xf]
        %v439 = vld [vmem:[%s391 + $0x48] sm:$0xf]
        %v440 = vld [vmem:[%s391 + $0x4c] sm:$0xf]
        %v441 = vld [vmem:[%s391 + $0x50] sm:$0xf]
        %v442 = vld [vmem:[%s391 + $0x54] sm:$0xf]
        %v443 = vld [vmem:[%s391 + $0x58] sm:$0xf]
        %v444 = vld [vmem:[%s391 + $0x5c] sm:$0xf]
        %v445 = vld [vmem:[%s391 + $0x60] sm:$0xf]
        %v446 = vld [vmem:[%s391 + $0x64] sm:$0xf]
        %v447 = vld [vmem:[%s391 + $0x68] sm:$0xf]
        %v448 = vld [vmem:[%s391 + $0x6c] sm:$0xf]
        %v449 = vld [vmem:[%s391 + $0x70] sm:$0xf]
        %v450 = vld [vmem:[%s391 + $0x74] sm:$0xf]
        %v451 = vld [vmem:[%s391 + $0x78] sm:$0xf]
        %v452 = vld [vmem:[%s391 + $0x7c] sm:$0xf]
        %v485 = vunpack.c.l.b16 %v421
        %v486 = vunpack.c.l.b16 %v422
        %v487 = vunpack.c.l.b16 %v423
        %v488 = vunpack.c.l.b16 %v424
        %v489 = vunpack.c.l.b16 %v425
        %v490 = vunpack.c.l.b16 %v426
        %v491 = vunpack.c.l.b16 %v427
        %v492 = vunpack.c.l.b16 %v428
        %v493 = vunpack.c.l.b16 %v429
        %v494 = vunpack.c.l.b16 %v430
        %v495 = vunpack.c.l.b16 %v431
        %v496 = vunpack.c.l.b16 %v432
        %v497 = vunpack.c.l.b16 %v433
        %v498 = vunpack.c.l.b16 %v434
        %v499 = vunpack.c.l.b16 %v435
        %v500 = vunpack.c.l.b16 %v436
        %v501 = vunpack.c.l.b16 %v437
        %v502 = vunpack.c.l.b16 %v438
        %v503 = vunpack.c.l.b16 %v439
        %v504 = vunpack.c.l.b16 %v440
        %v505 = vunpack.c.l.b16 %v441
        %v506 = vunpack.c.l.b16 %v442
        %v507 = vunpack.c.l.b16 %v443
        %v508 = vunpack.c.l.b16 %v444
        %v509 = vunpack.c.l.b16 %v445
        %v510 = vunpack.c.l.b16 %v446
        %v511 = vunpack.c.l.b16 %v447
        %v512 = vunpack.c.l.b16 %v448
        %v513 = vunpack.c.l.b16 %v449
        %v514 = vunpack.c.l.b16 %v450
        %v515 = vunpack.c.l.b16 %v451
        %v516 = vunpack.c.l.b16 %v452
        %v517 = vpack.c.b16 %v486, %v485
        %v518 = vpack.c.b16 %v488, %v487
        %v519 = vpack.c.b16 %v490, %v489
        %v520 = vpack.c.b16 %v492, %v491
        %v521 = vpack.c.b16 %v494, %v493
        %v522 = vpack.c.b16 %v496, %v495
        %v523 = vpack.c.b16 %v498, %v497
        %v524 = vpack.c.b16 %v500, %v499
        %v525 = vpack.c.b16 %v502, %v501
        %v526 = vpack.c.b16 %v504, %v503
        %v527 = vpack.c.b16 %v506, %v505
        %v528 = vpack.c.b16 %v508, %v507
        %v529 = vpack.c.b16 %v510, %v509
        %v530 = vpack.c.b16 %v512, %v511
        %v531 = vpack.c.b16 %v514, %v513
        %v532 = vpack.c.b16 %v516, %v515
        %549 = vmatprep.subr.bf16.mxu0 0
        %550 = vmatpush1.bf16.msra.mxu0 %v524
        %551 = vmatprep.subr.bf16.mxu0 0
        %552 = vmatpush1.bf16.msra.mxu0 %v523
        %553 = vmatprep.subr.bf16.mxu0 0
        %554 = vmatpush1.bf16.msra.mxu0 %v522
        %555 = vmatprep.subr.bf16.mxu0 0
        %556 = vmatpush1.bf16.msra.mxu0 %v521
        %557 = vmatprep.subr.bf16.mxu0 0
        %558 = vmatpush1.bf16.msra.mxu0 %v520
        %559 = vmatprep.subr.bf16.mxu0 0
        %560 = vmatpush1.bf16.msra.mxu0 %v519
        %561 = vmatprep.subr.bf16.mxu0 0
        %562 = vmatpush1.bf16.msra.mxu0 %v518
        %563 = vmatprep.subr.bf16.mxu0 0
        %564 = vmatpush1.bf16.msra.mxu0 %v517
        %565 = vmatprep.subr.bf16.mxu0 0
        %566 = vmatpush2.bf16.msra.mxu0 %v532
        %567 = vmatprep.subr.bf16.mxu0 0
        %568 = vmatpush2.bf16.msra.mxu0 %v531
        %569 = vmatprep.subr.bf16.mxu0 0
        %570 = vmatpush2.bf16.msra.mxu0 %v530
        %571 = vmatprep.subr.bf16.mxu0 0
        %572 = vmatpush2.bf16.msra.mxu0 %v529
        %573 = vmatprep.subr.bf16.mxu0 0
        %574 = vmatpush2.bf16.msra.mxu0 %v528
        %575 = vmatprep.subr.bf16.mxu0 0
        %576 = vmatpush2.bf16.msra.mxu0 %v527
        %577 = vmatprep.subr.bf16.mxu0 0
        %578 = vmatpush2.bf16.msra.mxu0 %v526
        %579 = vmatprep.subr.bf16.mxu0 0
        %580 = vmatpush2.bf16.msra.mxu0 %v525
        %581 = vmatprep.mubr.bf16.mxu0 %v414
        %582 = vmatmul.mubr.bf16.gmra.mxu0 %v413
        %v583 = vpop.f32.mrf.mxu0
        %v584 = vadd.f32 0.0, %v583
        %v585 = vpop.f32.mrf.mxu0
        %v586 = vpop.f32.mrf.mxu0
        %v587 = vadd.f32 0.0, %v586
        %v588 = vpop.f32.mrf.mxu0
        %589 = vmatprep.mubr.bf16.mxu0 %v416
        %590 = vmatmul.mubr.bf16.gmra.mxu0 %v415
        %v591 = vpop.f32.mrf.mxu0
        %v592 = vadd.f32 0.0, %v591
        %v593 = vpop.f32.mrf.mxu0
        %v594 = vpop.f32.mrf.mxu0
        %v595 = vadd.f32 0.0, %v594
        %v596 = vpop.f32.mrf.mxu0
        %597 = vdwg.mxu0
        %v598 = vadd.f32 %v417, %v584
        %v599 = vadd.f32 %v418, %v587
        %v600 = vadd.f32 %v419, %v592
        %v601 = vadd.f32 %v420, %v595
        %vm602 = vcmask 261120
        %603 = vst.msk [vmem:[%s344] sm:$0xff] %vm602, %v598
        %604 = vst.msk [vmem:[%s344 + $0x8] sm:$0xff] %vm602, %v599
        %605 = vst.msk [vmem:[%s344 + $0x10] sm:$0xff] %vm602, %v600
        %606 = vst.msk [vmem:[%s344 + $0x18] sm:$0xff] %vm602, %v601
        %s607 = sand.u32 %s189, 1
        %s608 = scalar_lea.sflag [#allocation3], %s607
        %s609 = sand.u32 %s189, 1
        %s610 = smul.addr %s609, 32
        %s611 = scalar_lea.vmem [#allocation2], %s610
        // Predicated region
        $region45: #{tpu_custom_call.1} parent=39 // pred_check
          %p612 = pneg %p199
        $region46: #{tpu_custom_call.1} parent=39 // pred_check_branch
          %614 = sbr.rel (%p612) target = $region48
        $region47: #{tpu_custom_call.1} parent=39 // pred_region
          %s616 = ssub.s32 512, 512
          %617 = vsyncadd %s608, %s616
          %s618 = smul.addr %s23, 4
          %s619 = smul.addr %s618, 128
          %s620 = scalar_lea.hbm %s5, %s619
          %s621 = sshll.u32 %s611, 4
          %s622 = int_to_ptr.vmem [resolvable:$true] %s621
          %627 = dma.vmem_to_hbm [thread:$0]  %s622, 512, %s620, %s608, 128, 128, 8
        $region48: #{tpu_custom_call.1} parent=39 // pred_fallthru
          _
      $region40: #{tpu_custom_call.1} parent=5 // pred_fallthru
        _
      %p628 = scmp.le.s32.totalorder 2, %s14
      // Predicated region
      $region49: #{tpu_custom_call.1} parent=5 // pred_check
        %p629 = pneg %p628
      $region50: #{tpu_custom_call.1} parent=5 // pred_check_branch
        %631 = sbr.rel (%p629) target = $region52
      $region51: #{tpu_custom_call.1} parent=5 // pred_region
        %s632 = ssub.s32 %s14, 2
        // Predicated region
        $region53: #{tpu_custom_call.1} parent=51 // pred_check
          %p633 = pneg %p205
        $region54: #{tpu_custom_call.1} parent=51 // pred_check_branch
          %635 = sbr.rel (%p633) target = $region56
        $region55: #{tpu_custom_call.1} parent=51 // pred_region
          %s636 = sand.u32 %s190, 1
          %s637 = scalar_lea.sflag [#allocation3], %s636
          %s638 = sand.u32 %s190, 1
          %s639 = smul.addr %s638, 32
          %s640 = scalar_lea.vmem [#allocation2], %s639
          %641 = dma.done %s637, 512
        $region56: #{tpu_custom_call.1} parent=51 // pred_fallthru
          _
      $region52: #{tpu_custom_call.1} parent=5 // pred_fallthru
        _
    $region6: #{tpu_custom_call.1} parent=1 // loop_footer
      %s18 = sadd.s32 1, %s14
    $region7: #{tpu_custom_call.1} parent=1 // loop_footer_branch
      %13 = sbr.rel target = $region3
    $region8: #{tpu_custom_call.1} parent=1 // loop_exit
      _
    %642 = vsyncpa [#allocation3], 1
    %s643 = scalar_lea.sflag [#allocation3], 1
    %644 = vsyncpa %s643, 1

</llo_original>
